<compile_context>
chip_gen: v5e
topology: v5e:2x2
jax: 0.10.0
libtpu: 0.0.40
codegen_flags: <defaults>
</compile_context>

<pallas_src>
import functools

import jax
import jax.numpy as jnp
from jax import lax
from jax.experimental import pallas as pl
from jax.experimental.pallas import tpu as pltpu


def _round_up(x, m):
    return (x + m - 1) // m * m


# ----------------------------------------------------------------------------
# Pass 1: fused [raw | mask] matmul + gate + partial BN statistics, tiled on M
# ----------------------------------------------------------------------------
def _fused_conv_gate_kernel(xcol_ref, w_ref, b_ref,
                            raw_ref, gate_ref, stats_ref, *,
                            cout_p, tile_m, m_total, negative_slope):
    i = pl.program_id(0)

    x = xcol_ref[...]                                       # (tile_m, CK)
    # One MXU pass for BOTH convolutions; single bias add on the fused result.
    y = jnp.dot(x, w_ref[...], preferred_element_type=jnp.float32) + b_ref[...]
    raw = y[:, :cout_p]                                     # conv1d(input)
    gate = jax.nn.sigmoid(y[:, cout_p:])                    # sigmoid(mask_conv1d)

    raw_ref[...] = raw
    gate_ref[...] = gate

    # LeakyReLU(0.2)(raw) * gate -- only needed here for the BN statistics.
    act = jnp.where(raw >= 0.0, raw, negative_slope * raw)
    xg = act * gate

    # Mask rows past the true M so zero-padded rows never pollute the GLOBAL
    # BatchNorm statistics (padded rows still see the bias -> nonzero xg).
    row = i * tile_m + lax.broadcasted_iota(jnp.int32, (tile_m, 1), 0)
    valid = (row < m_total).astype(jnp.float32)
    xgv = xg * valid

    s0 = jnp.sum(xgv, axis=0, keepdims=True)                # (1, cout_p)
    s1 = jnp.sum(xgv * xgv, axis=0, keepdims=True)          # (1, cout_p)
    stats_ref[...] = jnp.concatenate([s0, s1], axis=0).reshape(1, 2, cout_p)


# ----------------------------------------------------------------------------
# Pass 2: apply the global batch-norm (trivially mem-bound), tiled on M
# ----------------------------------------------------------------------------
def _bn_apply_kernel(raw_ref, gate_ref, scale_ref, shift_ref, out_ref, *,
                     negative_slope):
    raw = raw_ref[...]
    gate = gate_ref[...]
    act = jnp.where(raw >= 0.0, raw, negative_slope * raw)
    xg = act * gate
    out_ref[...] = xg * scale_ref[...] + shift_ref[...]


# ----------------------------------------------------------------------------
# Wrapper: im2col glue + two pallas_calls
# ----------------------------------------------------------------------------
def gated_conv1d_with_activation(x, w1, b1, w2, b2, *,
                                 stride=1, padding=0, dilation=1,
                                 negative_slope=0.2, eps=1e-5,
                                 tile_m=512):
    """x: (B, Cin, L) float32.  w*: (Cout, Cin, K).  b*: (Cout,).

    Returns (bn_out, raw, gate), each (B, Cout, Lout) — same as the PyTorch
    module with batch_norm=True (training-mode batch statistics)."""
    B, Cin, L = x.shape
    Cout, _, K = w1.shape
    Lout = (L + 2 * padding - dilation * (K - 1) - 1) // stride + 1
    assert Lout > 0

    # ---- im2col (plain JAX glue) ----
    xp = jnp.pad(x, ((0, 0), (0, 0), (padding, padding)))
    cols = []
    for k in range(K):
        start = k * dilation
        cols.append(lax.slice(xp, (0, 0, start),
                              (B, Cin, start + (Lout - 1) * stride + 1),
                              (1, 1, stride)))              # (B, Cin, Lout)
    # (B, Cin, K, Lout) -> (B, Lout, Cin, K) -> (B*Lout, Cin*K)
    xcol = jnp.stack(cols, axis=2).transpose(0, 3, 1, 2)
    xcol = xcol.reshape(B * Lout, Cin * K).astype(jnp.float32)

    M, CK = xcol.shape

    # Lane-dense output channels: pad Cout up to a multiple of 128 so every
    # raw/gate/bn store is an unmasked full-lane store and the [raw|mask] split
    # of the fused matmul result is a lane-aligned static slice.  Padded
    # channels have zero weight/bias and are sliced away at the end.
    Cp = _round_up(Cout, 128)

    # M tiling: ~512 rows per tile (measured sweet spot), multiple of 8.
    tm = min(tile_m, _round_up(M, 8))
    M_pad = _round_up(M, tm)
    n_tiles = M_pad // tm

    xcol_p = jnp.pad(xcol, ((0, M_pad - M), (0, 0)))

    def prep_w(w):                                          # -> (CK, Cp)
        wm = w.reshape(Cout, Cin * K).T.astype(jnp.float32)
        return jnp.pad(wm, ((0, 0), (0, Cp - Cout)))

    wcat = jnp.concatenate([prep_w(w1), prep_w(w2)], axis=1)        # (CK, 2*Cp)
    bcat = jnp.concatenate([jnp.pad(b1.astype(jnp.float32), (0, Cp - Cout)),
                            jnp.pad(b2.astype(jnp.float32), (0, Cp - Cout))]
                           ).reshape(1, 2 * Cp)

    cparams = pltpu.CompilerParams(
        # M tiles are independent -> shard across v7x's 2 TensorCores; neutral
        # on v5e/v6e.
        dimension_semantics=("parallel",),
        # Explicit VMEM budget that fits v7x's 64 MiB physical VMEM while
        # keeping double-buffering alive on all generations.
        vmem_limit_bytes=48 * 1024 * 1024,
    )

    # ---------------- pass 1 ----------------
    kernel1 = functools.partial(_fused_conv_gate_kernel,
                                cout_p=Cp, tile_m=tm, m_total=M,
                                negative_slope=negative_slope)
    cost1 = pl.CostEstimate(
        flops=2 * M_pad * CK * (2 * Cp) + 8 * M_pad * Cp,
        transcendentals=M_pad * Cp,
        bytes_accessed=4 * (M_pad * CK + CK * 2 * Cp + 2 * Cp
                            + 2 * M_pad * Cp + n_tiles * 2 * Cp))

    raw_p, gate_p, stats = pl.pallas_call(
        kernel1,
        out_shape=(jax.ShapeDtypeStruct((M_pad, Cp), jnp.float32),
                   jax.ShapeDtypeStruct((M_pad, Cp), jnp.float32),
                   jax.ShapeDtypeStruct((n_tiles, 2, Cp), jnp.float32)),
        grid=(n_tiles,),
        in_specs=[pl.BlockSpec((tm, CK), lambda i: (i, 0)),
                  pl.BlockSpec((CK, 2 * Cp), lambda i: (0, 0)),
                  pl.BlockSpec((1, 2 * Cp), lambda i: (0, 0))],
        out_specs=(pl.BlockSpec((tm, Cp), lambda i: (i, 0)),
                   pl.BlockSpec((tm, Cp), lambda i: (i, 0)),
                   pl.BlockSpec((1, 2, Cp), lambda i: (i, 0, 0))),
        compiler_params=cparams,
        cost_estimate=cost1,
    )(xcol_p, wcat, bcat)

    # ---- tiny global BN statistics reduction (training-mode, biased var) ----
    psum = jnp.sum(stats[:, 0, :], axis=0)                  # (Cp,)
    psumsq = jnp.sum(stats[:, 1, :], axis=0)                # (Cp,)
    mean = psum / M
    # One-pass variance E[x^2] - E[x]^2 in f32 (clamped against tiny negative
    # cancellation). Activations are O(1) so this stays well within tolerance.
    var = jnp.maximum(psumsq / M - mean * mean, 0.0)
    inv_std = lax.rsqrt(var + eps)
    scale = inv_std.reshape(1, Cp)
    shift = (-mean * inv_std).reshape(1, Cp)

    # ---------------- pass 2 ----------------
    kernel2 = functools.partial(_bn_apply_kernel, negative_slope=negative_slope)
    cost2 = pl.CostEstimate(
        flops=5 * M_pad * Cp,
        transcendentals=0,
        bytes_accessed=4 * (3 * M_pad * Cp + 2 * Cp))

    bn_p = pl.pallas_call(
        kernel2,
        out_shape=jax.ShapeDtypeStruct((M_pad, Cp), jnp.float32),
        grid=(n_tiles,),
        in_specs=[pl.BlockSpec((tm, Cp), lambda i: (i, 0)),
                  pl.BlockSpec((tm, Cp), lambda i: (i, 0)),
                  pl.BlockSpec((1, Cp), lambda i: (0, 0)),
                  pl.BlockSpec((1, Cp), lambda i: (0, 0))],
        out_specs=pl.BlockSpec((tm, Cp), lambda i: (i, 0)),
        compiler_params=cparams,
        cost_estimate=cost2,
    )(raw_p, gate_p, scale, shift)

    # (M_pad, Cp) -> slice valid region -> (B, Cout, Lout)  (back to NCL)
    def to_ncl(a):
        return a[:M, :Cout].reshape(B, Lout, Cout).transpose(0, 2, 1)

    return to_ncl(bn_p), to_ncl(raw_p), to_ncl(gate_p)


# ----------------------------------------------------------------------------
# Pure-JAX reference (for a sanity check)
# ----------------------------------------------------------------------------
def _reference(x, w1, b1, w2, b2, *, stride, padding, dilation,
               negative_slope=0.2, eps=1e-5):
    def conv(w, b):
        y = lax.conv_general_dilated(
            x, w, window_strides=(stride,), padding=[(padding, padding)],
            rhs_dilation=(dilation,),
            dimension_numbers=("NCH", "OIH", "NCH"))
        return y + b.reshape(1, -1, 1)
    raw = conv(w1, b1)
    gate = jax.nn.sigmoid(conv(w2, b2))
    act = jnp.where(raw >= 0, raw, negative_slope * raw)
    xg = act * gate
    mean = jnp.mean(xg, axis=(0, 2), keepdims=True)
    var = jnp.mean((xg - mean) ** 2, axis=(0, 2), keepdims=True)
    bn = (xg - mean) * lax.rsqrt(var + eps)
    return bn, raw, gate


if __name__ == "__main__":
    # Small, deterministic config (consistent with nn.Conv1d / NCL inputs).
    B, Cin, Cout, L, K = 2, 4, 8, 16, 3
    stride, padding, dilation = 1, 1, 1

    key = jax.random.PRNGKey(0)
    kx, kw1, kb1, kw2, kb2 = jax.random.split(key, 5)

    x = jax.random.normal(kx, (B, Cin, L), dtype=jnp.float32)

    # kaiming_normal_ (fan_in, gain sqrt(2)) for conv weights.
    fan_in = Cin * K
    std = (2.0 / fan_in) ** 0.5
    w1 = jax.random.normal(kw1, (Cout, Cin, K), dtype=jnp.float32) * std
    w2 = jax.random.normal(kw2, (Cout, Cin, K), dtype=jnp.float32) * std
    # Conv1d default bias init: U(-1/sqrt(fan_in), 1/sqrt(fan_in)).
    bound = 1.0 / (fan_in ** 0.5)
    b1 = jax.random.uniform(kb1, (Cout,), jnp.float32, -bound, bound)
    b2 = jax.random.uniform(kb2, (Cout,), jnp.float32, -bound, bound)

    bn_out, raw, gate = gated_conv1d_with_activation(
        x, w1, b1, w2, b2, stride=stride, padding=padding, dilation=dilation)
    jax.block_until_ready((bn_out, raw, gate))

    # Sanity check against a pure-JAX reference.
    bn_r, raw_r, gate_r = _reference(x, w1, b1, w2, b2,
                                     stride=stride, padding=padding,
                                     dilation=dilation)
    assert jnp.allclose(raw, raw_r, atol=1e-4, rtol=1e-4)
    assert jnp.allclose(gate, gate_r, atol=1e-4, rtol=1e-4)
    assert jnp.allclose(bn_out, bn_r, atol=1e-4, rtol=1e-4)

    print("KERNEL_OK")
</pallas_src>

<mosaic_0001>
module attributes {stable_mosaic.version = 11 : i64} {
  func.func @_fused_conv_gate_kernel(%arg0: i32, %arg1: memref<32x12xf32, #tpu.memory_space<vmem>>, %arg2: memref<12x256xf32, #tpu.memory_space<vmem>>, %arg3: memref<1x256xf32, #tpu.memory_space<vmem>>, %arg4: memref<32x128xf32, #tpu.memory_space<vmem>>, %arg5: memref<32x128xf32, #tpu.memory_space<vmem>>, %arg6: memref<1x2x128xf32, #tpu.memory_space<vmem>>) attributes {dimension_semantics = [#tpu.dimension_semantics<parallel>], iteration_bounds = array<i64: 1>, scalar_prefetch = 0 : i64, scratch_operands = 0 : i64, tpu.core_type = #tpu.core_type<tc>, window_params = [{transform_indices = @transform_0, window_bounds = array<i64: 32, 12>}, {pipeline_mode = #tpu.pipeline_mode<synchronous>, transform_indices = @transform_1, window_bounds = array<i64: 12, 256>}, {pipeline_mode = #tpu.pipeline_mode<synchronous>, transform_indices = @transform_2, window_bounds = array<i64: 1, 256>}, {transform_indices = @transform_3, window_bounds = array<i64: 32, 128>}, {transform_indices = @transform_4, window_bounds = array<i64: 32, 128>}, {transform_indices = @transform_5, window_bounds = array<i64: 1, 2, 128>}]} {
    %c0 = arith.constant 0 : index
    %c0_0 = arith.constant 0 : index
    %0 = vector.load %arg1[%c0, %c0_0] : memref<32x12xf32, #tpu.memory_space<vmem>>, vector<32x12xf32>
    %c0_1 = arith.constant 0 : index
    %c0_2 = arith.constant 0 : index
    %1 = vector.load %arg2[%c0_1, %c0_2] : memref<12x256xf32, #tpu.memory_space<vmem>>, vector<12x256xf32>
    %cst = arith.constant dense<0.000000e+00> : vector<32x256xf32>
    %2 = tpu.matmul %0, %1, %cst {dimension_numbers = #tpu.dot_dimension_numbers<[1], [0], [0], [1], [0, 0, 1, 1], [], []>} : vector<32x12xf32>, vector<12x256xf32>, vector<32x256xf32> -> vector<32x256xf32>
    %c0_3 = arith.constant 0 : index
    %c0_4 = arith.constant 0 : index
    %3 = vector.load %arg3[%c0_3, %c0_4] : memref<1x256xf32, #tpu.memory_space<vmem>>, vector<1x256xf32>
    %4 = vector.broadcast %3 : vector<1x256xf32> to vector<32x256xf32>
    %5 = arith.addf %2, %4 : vector<32x256xf32>
    %6 = vector.extract_strided_slice %5 {offsets = [0, 0], sizes = [32, 128], strides = [1, 1]} : vector<32x256xf32> to vector<32x128xf32>
    %7 = vector.extract_strided_slice %5 {offsets = [0, 128], sizes = [32, 128], strides = [1, 1]} : vector<32x256xf32> to vector<32x128xf32>
    %8 = arith.negf %7 : vector<32x128xf32>
    %9 = math.exp %8 : vector<32x128xf32>
    %cst_5 = arith.constant 1.000000e+00 : f32
    %10 = vector.broadcast %cst_5 : f32 to vector<32x128xf32>
    %11 = arith.addf %10, %9 : vector<32x128xf32>
    %12 = arith.divf %10, %11 : vector<32x128xf32>
    %c0_6 = arith.constant 0 : index
    %c0_7 = arith.constant 0 : index
    %13 = vector.load %arg4[%c0_6, %c0_7] : memref<32x128xf32, #tpu.memory_space<vmem>>, vector<32x128xf32>
    tpu.vector_store %arg4[%c0_6, %c0_7], %6 {strides = array<i32>} : memref<32x128xf32, #tpu.memory_space<vmem>>, vector<32x128xf32>,
    %c0_8 = arith.constant 0 : index
    %c0_9 = arith.constant 0 : index
    %14 = vector.load %arg5[%c0_8, %c0_9] : memref<32x128xf32, #tpu.memory_space<vmem>>, vector<32x128xf32>
    tpu.vector_store %arg5[%c0_8, %c0_9], %12 {strides = array<i32>} : memref<32x128xf32, #tpu.memory_space<vmem>>, vector<32x128xf32>,
    %cst_10 = arith.constant 0.000000e+00 : f32
    %15 = vector.broadcast %cst_10 : f32 to vector<32x128xf32>
    %16 = arith.cmpf oge, %6, %15 : vector<32x128xf32>
    %cst_11 = arith.constant 2.000000e-01 : f32
    %17 = vector.broadcast %cst_11 : f32 to vector<32x128xf32>
    %18 = arith.mulf %17, %6 : vector<32x128xf32>
    %19 = arith.select %16, %6, %18 : vector<32x128xi1>, vector<32x128xf32>
    %20 = arith.mulf %19, %12 : vector<32x128xf32>
    %c32_i32 = arith.constant 32 : i32
    %21 = arith.muli %arg0, %c32_i32 : i32
    %22 = tpu.iota {dimensions = array<i32: 0>} : vector<32x1xi32>
    %23 = vector.broadcast %21 : i32 to vector<32x1xi32>
    %24 = arith.addi %23, %22 : vector<32x1xi32>
    %c32_i32_12 = arith.constant 32 : i32
    %25 = vector.broadcast %c32_i32_12 : i32 to vector<32x1xi32>
    %26 = arith.cmpi slt, %24, %25 : vector<32x1xi32>
    %27 = arith.extui %26 : vector<32x1xi1> to vector<32x1xi32>
    %28 = arith.sitofp %27 : vector<32x1xi32> to vector<32x1xf32>
    %29 = vector.broadcast %28 : vector<32x1xf32> to vector<32x128xf32>
    %30 = arith.mulf %20, %29 : vector<32x128xf32>
    %cst_13 = arith.constant dense<0.000000e+00> : vector<128xf32>
    %31 = vector.multi_reduction <add>, %30, %cst_13 [0] : vector<32x128xf32> to vector<128xf32>
    %32 = vector.shape_cast %31 : vector<128xf32> to vector<1x128xf32>
    %33 = arith.mulf %30, %30 : vector<32x128xf32>
    %cst_14 = arith.constant dense<0.000000e+00> : vector<128xf32>
    %34 = vector.multi_reduction <add>, %33, %cst_14 [0] : vector<32x128xf32> to vector<128xf32>
    %35 = vector.shape_cast %34 : vector<128xf32> to vector<1x128xf32>
    %36 = tpu.concatenate %32, %35 in 0 : vector<1x128xf32>, vector<1x128xf32> -> vector<2x128xf32>
    %37 = vector.shape_cast %36 : vector<2x128xf32> to vector<1x2x128xf32>
    %c0_15 = arith.constant 0 : index
    %c0_16 = arith.constant 0 : index
    %c0_17 = arith.constant 0 : index
    %38 = vector.load %arg6[%c0_15, %c0_16, %c0_17] : memref<1x2x128xf32, #tpu.memory_space<vmem>>, vector<1x2x128xf32>
    tpu.vector_store %arg6[%c0_15, %c0_16, %c0_17], %37 {strides = array<i32>} : memref<1x2x128xf32, #tpu.memory_space<vmem>>, vector<1x2x128xf32>,
    return
  }
  func.func @transform_0(%arg0: i32) -> (i32, i32) {
    %c0_i32 = arith.constant 0 : i32
    %c0_i32_0 = arith.constant 0 : i32
    return %arg0, %c0_i32 : i32, i32
  }
  func.func @transform_1(%arg0: i32) -> (i32, i32) {
    %c0_i32 = arith.constant 0 : i32
    %c0_i32_0 = arith.constant 0 : i32
    %c0_i32_1 = arith.constant 0 : i32
    return %c0_i32, %c0_i32_0 : i32, i32
  }
  func.func @transform_2(%arg0: i32) -> (i32, i32) {
    %c0_i32 = arith.constant 0 : i32
    %c0_i32_0 = arith.constant 0 : i32
    %c0_i32_1 = arith.constant 0 : i32
    return %c0_i32, %c0_i32_0 : i32, i32
  }
  func.func @transform_3(%arg0: i32) -> (i32, i32) {
    %c0_i32 = arith.constant 0 : i32
    %c0_i32_0 = arith.constant 0 : i32
    return %arg0, %c0_i32 : i32, i32
  }
  func.func @transform_4(%arg0: i32) -> (i32, i32) {
    %c0_i32 = arith.constant 0 : i32
    %c0_i32_0 = arith.constant 0 : i32
    return %arg0, %c0_i32 : i32, i32
  }
  func.func @transform_5(%arg0: i32) -> (i32, i32, i32) {
    %c0_i32 = arith.constant 0 : i32
    %c0_i32_0 = arith.constant 0 : i32
    %c0_i32_1 = arith.constant 0 : i32
    return %arg0, %c0_i32, %c0_i32_0 : i32, i32, i32
  }
}

</mosaic_0001>

<llo_original>
// kernel: tpu_custom_call.1
$region0: #{tpu_custom_call.1}
  #allocation0 [shape = 'u32[]', space=smem, size = 0x4, offset = 0x4, fixed_abs, tag = 'smem constant byte address 0x4 - core index']
  #allocation1 [shape = 'u32[72,128]{1,0:T(1,128)}', space=vmem, size = 0x9000, scoped, tag = 'internal scratch']
  %s0 = inlined_call_operand.vmem [shape: f32[32,12], index: 0, kind: input, shape index: {}]
  %s1 = inlined_call_operand.vmem [shape: f32[12,256], index: 1, kind: input, shape index: {}]
  %s2 = inlined_call_operand.vmem [shape: f32[1,256], index: 2, kind: input, shape index: {}]
  %s3 = inlined_call_operand.hbm [shape: f32[32,128], index: 3, kind: output, shape index: {0}]
  %s4 = inlined_call_operand.hbm [shape: f32[32,128], index: 4, kind: output, shape index: {1}]
  %s5 = inlined_call_operand.hbm [shape: f32[1,2,128], index: 5, kind: output, shape index: {2}]
  %6 = xla_tuple %s3, %s4, %s5
  %s7 = sld [smem:[#allocation0]]
  $region38: #{tpu_custom_call.1} parent=0
    _
  %s9 = ssub.s32 1, %s7
  %s10 = scalar_select 0, %s9, %s7
  $region1: #{tpu_custom_call.1} parent=0
    #allocation2 [shape = 'u8[16384]{0}', space=vmem, size = 0x4000, scoped, tag = 'output window, operand 0, single buffered']
    #allocation3 [shape = 's32[1]{0}', space=sflag, size = 0x4, scoped, tag = 'scoped memory for tpu_custom_call.1']
    #allocation4 [shape = 'u8[16384]{0}', space=vmem, size = 0x4000, scoped, tag = 'output window, operand 1, single buffered']
    #allocation5 [shape = 's32[1]{0}', space=sflag, size = 0x4, scoped, tag = 'scoped memory for tpu_custom_call.1']
    #allocation6 [shape = 'u8[1024]{0}', space=vmem, size = 0x400, scoped, tag = 'output window, operand 2, single buffered']
    %11 = vsyncpa [#allocation3], 0
    %12 = vsyncpa [#allocation5], 0
    // Predicated region
    $region2: #{tpu_custom_call.1} parent=1 // pred_check
      _
    $region3: #{tpu_custom_call.1} parent=1 // pred_check_branch
      %14 = sbr.rel (0) target = $region5
    $region4: #{tpu_custom_call.1} parent=1 // pred_region
      _
    $region5: #{tpu_custom_call.1} parent=1 // pred_fallthru
      _
    // Predicated region
    $region6: #{tpu_custom_call.1} parent=1 // pred_check
      _
    $region7: #{tpu_custom_call.1} parent=1 // pred_check_branch
      %16 = sbr.rel (0) target = $region9
    $region8: #{tpu_custom_call.1} parent=1 // pred_region
      _
    $region9: #{tpu_custom_call.1} parent=1 // pred_fallthru
      _
    // Predicated region
    $region10: #{tpu_custom_call.1} parent=1 // pred_check
      _
    $region11: #{tpu_custom_call.1} parent=1 // pred_check_branch
      %18 = sbr.rel (0) target = $region13
    $region12: #{tpu_custom_call.1} parent=1 // pred_region
      _
    $region13: #{tpu_custom_call.1} parent=1 // pred_fallthru
      _
    %v19 = vld [vmem:[%s0] sm:$0xff]
    %v20 = vld [vmem:[%s0 + $0x8] sm:$0xff]
    %v21 = vld [vmem:[%s0 + $0x10] sm:$0xff]
    %v22 = vld [vmem:[%s0 + $0x18] sm:$0xff]
    %v23 = vld [vmem:[%s1] sm:$0xff]
    %v24 = vld [vmem:[%s1 + $0x8] sm:$0xff]
    %v25 = vld [vmem:[%s1 + $0x10] sm:$0xf]
    %v26 = vld [vmem:[%s1 + $0x18] sm:$0xf]
    %v27 = vld [vmem:[%s2] sm:$0x3]
    %v29 = vperm.slane %v27, 0
    %v30 = vperm.slane %v27, 1
    %vm33 = vcmask 97280
    %v35 = vsel %vm33, %v19, 0
    %v38 = vsel %vm33, %v20, 0
    %v41 = vsel %vm33, %v21, 0
    %v44 = vsel %vm33, %v22, 0
    %vm46 = vcmask 1043456
    %v48 = vsel %vm46, %v25, 0
    %v51 = vsel %vm46, %v26, 0
    %53 = vmatpush.msra.mxu0 0.0
    %54 = vmatpush.msra.mxu0 0.0
    %55 = vmatpush.msra.mxu0 0.0
    %56 = vmatpush.msra.mxu0 0.0
    %57 = vmatpush.msra.mxu0 0.0
    %58 = vmatpush.msra.mxu0 0.0
    %59 = vmatpush.msra.mxu0 0.0
    %60 = vmatpush.msra.mxu0 0.0
    %61 = vmatpush.msra.mxu0 0.0
    %62 = vmatpush.msra.mxu0 0.0
    %63 = vmatpush.msra.mxu0 0.0
    %64 = vmatpush.msra.mxu0 0.0
    %65 = vmatpush.msra.mxu0 0.0
    %66 = vmatpush.msra.mxu0 0.0
    %67 = vmatpush.msra.mxu0 %v48
    %68 = vmatpush.msra.mxu0 %v23
    %69 = vmatmul.f32.gmra.mxu0 %v35
    %v70 = vpop.f32.mrf.mxu0
    %v71 = vadd.f32 %v29, %v70
    %72 = vmatmul.f32.gmra.mxu0 %v38
    %v73 = vpop.f32.mrf.mxu0
    %v74 = vadd.f32 %v29, %v73
    %75 = vmatmul.f32.gmra.mxu0 %v41
    %v76 = vpop.f32.mrf.mxu0
    %v77 = vadd.f32 %v29, %v76
    %78 = vmatmul.f32.gmra.mxu0 %v44
    %v79 = vpop.f32.mrf.mxu0
    %v80 = vadd.f32 %v29, %v79
    %81 = vdwg.mxu0
    %82 = vmatpush.msra.mxu0 0.0
    %83 = vmatpush.msra.mxu0 0.0
    %84 = vmatpush.msra.mxu0 0.0
    %85 = vmatpush.msra.mxu0 0.0
    %86 = vmatpush.msra.mxu0 0.0
    %87 = vmatpush.msra.mxu0 0.0
    %88 = vmatpush.msra.mxu0 0.0
    %89 = vmatpush.msra.mxu0 0.0
    %90 = vmatpush.msra.mxu0 0.0
    %91 = vmatpush.msra.mxu0 0.0
    %92 = vmatpush.msra.mxu0 0.0
    %93 = vmatpush.msra.mxu0 0.0
    %94 = vmatpush.msra.mxu0 0.0
    %95 = vmatpush.msra.mxu0 0.0
    %96 = vmatpush.msra.mxu0 %v51
    %97 = vmatpush.msra.mxu0 %v24
    %98 = vmatmul.f32.gmra.mxu0 %v35
    %v99 = vpop.f32.mrf.mxu0
    %v100 = vadd.f32 %v30, %v99
    %101 = vmatmul.f32.gmra.mxu0 %v38
    %v102 = vpop.f32.mrf.mxu0
    %v103 = vadd.f32 %v30, %v102
    %104 = vmatmul.f32.gmra.mxu0 %v41
    %v105 = vpop.f32.mrf.mxu0
    %v106 = vadd.f32 %v30, %v105
    %107 = vmatmul.f32.gmra.mxu0 %v44
    %v108 = vpop.f32.mrf.mxu0
    %v109 = vadd.f32 %v30, %v108
    %110 = vdwg.mxu0
    %v111 = vxor.u32 %v100, 2147483648
    %v112 = vxor.u32 %v103, 2147483648
    %v113 = vxor.u32 %v106, 2147483648
    %v114 = vxor.u32 %v109, 2147483648
    %v115 = vmul.f32 %v111, 1.442695
    %v116 = vpow.pop %v115
    %v117 = vmul.f32 %v112, 1.442695
    %v118 = vpow.pop %v117
    %v119 = vmul.f32 %v113, 1.442695
    %v120 = vpow.pop %v119
    %v121 = vmul.f32 %v114, 1.442695
    %v122 = vpow.pop %v121
    %v123 = vadd.f32 %v116, 1.0
    %v124 = vadd.f32 %v118, 1.0
    %v125 = vadd.f32 %v120, 1.0
    %v126 = vadd.f32 %v122, 1.0
    %v127 = vrcp.pop %v123
    %v128 = vmul.f32 %v123, %v127
    %v129 = vsub.f32 1.0, %v128
    %v130 = vmul.f32 %v127, %v129
    %v131 = vadd.f32 %v127, %v130
    %vm132 = vweird.f32 %v123
    %vm133 = vweird.f32 %v127
    %vm134 = vmor %vm132, %vm133
    %v135 = vsel %vm134, %v127, %v131
    %v136 = vand.u32 2147483647, %v123
    %vm137 = vcmp.eq.f32.partialorder %v136, 8.507059e+37
    %v138 = vand.u32 %v123, 2147483648
    %v139 = vor.u32 1.1754944e-38, %v138
    %v140 = vsel %vm137, %v139, %v135
    %v141 = vmul.f32 1.0, %v140
    %v142 = vrcp.pop %v124
    %v143 = vmul.f32 %v124, %v142
    %v144 = vsub.f32 1.0, %v143
    %v145 = vmul.f32 %v142, %v144
    %v146 = vadd.f32 %v142, %v145
    %vm147 = vweird.f32 %v124
    %vm148 = vweird.f32 %v142
    %vm149 = vmor %vm147, %vm148
    %v150 = vsel %vm149, %v142, %v146
    %v151 = vand.u32 2147483647, %v124
    %vm152 = vcmp.eq.f32.partialorder %v151, 8.507059e+37
    %v153 = vand.u32 %v124, 2147483648
    %v154 = vor.u32 1.1754944e-38, %v153
    %v155 = vsel %vm152, %v154, %v150
    %v156 = vmul.f32 1.0, %v155
    %v157 = vrcp.pop %v125
    %v158 = vmul.f32 %v125, %v157
    %v159 = vsub.f32 1.0, %v158
    %v160 = vmul.f32 %v157, %v159
    %v161 = vadd.f32 %v157, %v160
    %vm162 = vweird.f32 %v125
    %vm163 = vweird.f32 %v157
    %vm164 = vmor %vm162, %vm163
    %v165 = vsel %vm164, %v157, %v161
    %v166 = vand.u32 2147483647, %v125
    %vm167 = vcmp.eq.f32.partialorder %v166, 8.507059e+37
    %v168 = vand.u32 %v125, 2147483648
    %v169 = vor.u32 1.1754944e-38, %v168
    %v170 = vsel %vm167, %v169, %v165
    %v171 = vmul.f32 1.0, %v170
    %v172 = vrcp.pop %v126
    %v173 = vmul.f32 %v126, %v172
    %v174 = vsub.f32 1.0, %v173
    %v175 = vmul.f32 %v172, %v174
    %v176 = vadd.f32 %v172, %v175
    %vm177 = vweird.f32 %v126
    %vm178 = vweird.f32 %v172
    %vm179 = vmor %vm177, %vm178
    %v180 = vsel %vm179, %v172, %v176
    %v181 = vand.u32 2147483647, %v126
    %vm182 = vcmp.eq.f32.partialorder %v181, 8.507059e+37
    %v183 = vand.u32 %v126, 2147483648
    %v184 = vor.u32 1.1754944e-38, %v183
    %v185 = vsel %vm182, %v184, %v180
    %v186 = vmul.f32 1.0, %v185
    %187 = vst [vmem:[#allocation2] sm:$0xff] %v71
    %188 = vst [vmem:[#allocation2 + $0x8] sm:$0xff] %v74
    %189 = vst [vmem:[#allocation2 + $0x10] sm:$0xff] %v77
    %190 = vst [vmem:[#allocation2 + $0x18] sm:$0xff] %v80
    %191 = vst [vmem:[#allocation4] sm:$0xff] %v141
    %192 = vst [vmem:[#allocation4 + $0x8] sm:$0xff] %v156
    %193 = vst [vmem:[#allocation4 + $0x10] sm:$0xff] %v171
    %194 = vst [vmem:[#allocation4 + $0x18] sm:$0xff] %v186
    %vm195 = vcmp.ge.f32.partialorder %v71, 0.0
    %vm196 = vcmp.ge.f32.partialorder %v74, 0.0
    %vm197 = vcmp.ge.f32.partialorder %v77, 0.0
    %vm198 = vcmp.ge.f32.partialorder %v80, 0.0
    %v199 = vmul.f32 %v71, 0.2
    %v200 = vmul.f32 %v74, 0.2
    %v201 = vmul.f32 %v77, 0.2
    %v202 = vmul.f32 %v80, 0.2
    %v203 = vsel %vm195, %v71, %v199
    %v204 = vsel %vm196, %v74, %v200
    %v205 = vsel %vm197, %v77, %v201
    %v206 = vsel %vm198, %v80, %v202
    %v207 = vmul.f32 %v203, %v141
    %v208 = vmul.f32 %v204, %v156
    %v209 = vmul.f32 %v205, %v171
    %v210 = vmul.f32 %v206, %v186
    %s211 = smul.u32 0, 32
    %v212 = vlaneseq
    %v213 = vshrl.u32 %v212, 7
    %v214 = vadd.s32 %v213, 8
    %v215 = vadd.s32 %v213, 16
    %v216 = vadd.s32 %v213, 24
    %v217 = vstv %s211
    %v218 = vadd.s32 %v217, %v213
    %v219 = vadd.s32 %v217, %v214
    %v220 = vadd.s32 %v217, %v215
    %v221 = vadd.s32 %v217, %v216
    %vm222 = vcmp.lt.s32.totalorder %v218, 32
    %vm223 = vcmp.lt.s32.totalorder %v219, 32
    %vm224 = vcmp.lt.s32.totalorder %v220, 32
    %vm225 = vcmp.lt.s32.totalorder %v221, 32
    %v226 = vsel %vm222, 1, 0
    %v227 = vsel %vm223, 1, 0
    %v228 = vsel %vm224, 1, 0
    %v229 = vsel %vm225, 1, 0
    %v230 = vcvt.s32.f32 %v226
    %v231 = vcvt.s32.f32 %v227
    %v232 = vcvt.s32.f32 %v228
    %v233 = vcvt.s32.f32 %v229
    %v234 = vmul.f32 %v207, %v230
    %v235 = vmul.f32 %v208, %v231
    %v236 = vmul.f32 %v209, %v232
    %v237 = vmul.f32 %v210, %v233
    %v238 = vadd.f32 %v234, %v235
    %v239 = vadd.f32 %v238, %v236
    %v240 = vadd.f32 %v239, %v237
    %v241 = vrot.slane %v240, 4
    %v242 = vadd.f32 %v240, %v241
    %v243 = vrot.slane %v242, 2
    %v244 = vadd.f32 %v242, %v243
    %v245 = vrot.slane %v244, 1
    %v246 = vadd.f32 %v244, %v245
    %v247 = vmul.f32 %v234, %v234
    %v248 = vmul.f32 %v235, %v235
    %v249 = vmul.f32 %v236, %v236
    %v250 = vmul.f32 %v237, %v237
    %v251 = vadd.f32 %v247, %v248
    %v252 = vadd.f32 %v251, %v249
    %v253 = vadd.f32 %v252, %v250
    %v254 = vrot.slane %v253, 4
    %v255 = vadd.f32 %v253, %v254
    %v256 = vrot.slane %v255, 2
    %v257 = vadd.f32 %v255, %v256
    %v258 = vrot.slane %v257, 1
    %v259 = vadd.f32 %v257, %v258
    %vm260 = vcmask 1040384
    %v261 = vsel %vm260, %v246, %v259
    %262 = vst [vmem:[#allocation6] sm:$0x3] %v261
    // Predicated region
    $region14: #{tpu_custom_call.1} parent=1 // pred_check
      _
    $region15: #{tpu_custom_call.1} parent=1 // pred_check_branch
      %264 = sbr.rel (0) target = $region17
    $region16: #{tpu_custom_call.1} parent=1 // pred_region
      %266 = vsyncadd [#allocation3], 0
      %s267 = sshll.u32 [#allocation2], 4
      %s268 = int_to_ptr.vmem [resolvable:$true] %s267
      %s269 = sshll.u32 %s3, 4
      %s270 = int_to_ptr.hbm [resolvable:$true] %s269
      %275 = dma.vmem_to_hbm [thread:$0]  %s268, 512, %s270, [#allocation3], 128, 128, 8
    $region17: #{tpu_custom_call.1} parent=1 // pred_fallthru
      _
    // Predicated region
    $region18: #{tpu_custom_call.1} parent=1 // pred_check
      _
    $region19: #{tpu_custom_call.1} parent=1 // pred_check_branch
      %277 = sbr.rel (0) target = $region21
    $region20: #{tpu_custom_call.1} parent=1 // pred_region
      %279 = vsyncadd [#allocation5], 0
      %s280 = sshll.u32 [#allocation4], 4
      %s281 = int_to_ptr.vmem [resolvable:$true] %s280
      %s282 = sshll.u32 %s4, 4
      %s283 = int_to_ptr.hbm [resolvable:$true] %s282
      %288 = dma.vmem_to_hbm [thread:$0]  %s281, 512, %s283, [#allocation5], 128, 128, 8
    $region21: #{tpu_custom_call.1} parent=1 // pred_fallthru
      _
    // Predicated region
    $region22: #{tpu_custom_call.1} parent=1 // pred_check
      _
    $region23: #{tpu_custom_call.1} parent=1 // pred_check_branch
      %290 = sbr.rel (0) target = $region25
    $region24: #{tpu_custom_call.1} parent=1 // pred_region
      %292 = vsyncadd [#allocation5], 0
      %s294 = sshll.u32 [#allocation6], 4
      %s295 = int_to_ptr.vmem [resolvable:$true] %s294
      %s296 = sshll.u32 %s5, 4
      %s297 = int_to_ptr.hbm [resolvable:$true] %s296
      %299 = dma.vmem_to_hbm [thread:$0]  %s295, 32, %s297, [#allocation5]
    $region25: #{tpu_custom_call.1} parent=1 // pred_fallthru
      _
    // Predicated region
    $region26: #{tpu_custom_call.1} parent=1 // pred_check
      _
    $region27: #{tpu_custom_call.1} parent=1 // pred_check_branch
      %301 = sbr.rel (0) target = $region29
    $region28: #{tpu_custom_call.1} parent=1 // pred_region
      %303 = dma.done [#allocation3], 512
    $region29: #{tpu_custom_call.1} parent=1 // pred_fallthru
      _
    // Predicated region
    $region30: #{tpu_custom_call.1} parent=1 // pred_check
      _
    $region31: #{tpu_custom_call.1} parent=1 // pred_check_branch
      %305 = sbr.rel (0) target = $region33
    $region32: #{tpu_custom_call.1} parent=1 // pred_region
      %307 = dma.done [#allocation5], 512
    $region33: #{tpu_custom_call.1} parent=1 // pred_fallthru
      _
    // Predicated region
    $region34: #{tpu_custom_call.1} parent=1 // pred_check
      _
    $region35: #{tpu_custom_call.1} parent=1 // pred_check_branch
      %309 = sbr.rel (0) target = $region37
    $region36: #{tpu_custom_call.1} parent=1 // pred_region
      %311 = dma.done [#allocation5], 32
    $region37: #{tpu_custom_call.1} parent=1 // pred_fallthru
      _
    %312 = vsyncpa [#allocation3], 1
    %313 = vsyncpa [#allocation5], 1

</llo_original>
